<compile_context>
chip_gen: v7x
topology: tpu7x:2x2x1
jax: 0.10.0
libtpu: 0.0.40
codegen_flags: <defaults>
</compile_context>

<pallas_src>
import functools

import jax
import jax.numpy as jnp
from jax import lax
from jax.experimental import pallas as pl
from jax.experimental.pallas import tpu as pltpu


def _round_up(x, m):
    return ((x + m - 1) // m) * m


def temporal_block_kernel(x_ref, w1_ref, w2_ref, b_ref, *rest,
                          TL, k, dilation, pad, pad_off, has_downsample):
    """One (batch, time-tile) grid step.

    x_ref  : (TL, Cin_p)        current time tile of channels-last x
    w1_ref : (k, Cin_p, Cout_p) per-tap matmul weights of conv1
    w2_ref : (k, Cout_p, Cout_p) per-tap matmul weights of conv2
    b_ref  : (2|3, Cout_p)      rows = [b1, b2, (bd)]  (f32)
    wd_ref : (Cin_p, Cout_p)    1x1 downsample weight (only if has_downsample)
    o_ref  : (TL, Cout_p)
    xbuf   : (pad_off+TL, Cin_p)  VMEM: causal halo of x + current tile
    hbuf   : (pad_off+TL, Cout_p) VMEM: causal halo of h1 + current tile
    """
    if has_downsample:
        wd_ref, o_ref, xbuf, hbuf = rest
    else:
        o_ref, xbuf, hbuf = rest
        wd_ref = None

    t = pl.program_id(1)
    Cout_p = o_ref.shape[-1]
    halo = pad_off - pad  # first row of the causal halo inside the buffers

    # ---- stage the current tile; reset the causal halo at t == 0 -------------
    if pad > 0:
        @pl.when(t == 0)
        def _():
            xbuf[pl.ds(halo, pad), :] = jnp.zeros((pad, xbuf.shape[-1]),
                                                  xbuf.dtype)
            hbuf[pl.ds(halo, pad), :] = jnp.zeros((pad, Cout_p), hbuf.dtype)
    xbuf[pl.ds(pad_off, TL), :] = x_ref[...]

    # Hoist bias rows once (f32).
    b1 = b_ref[0:1, :]
    b2 = b_ref[1:2, :]

    # ---- conv1 (dilated, causal) + bias + relu -------------------------------
    # Bias folded into the accumulator init.
    acc1 = jnp.broadcast_to(b1, (TL, Cout_p))
    for j in range(k):  # k is a small Python constant -> unrolled taps
        acc1 = acc1 + jnp.dot(xbuf[pl.ds(halo + j * dilation, TL), :],
                              w1_ref[j], preferred_element_type=jnp.float32)
    h1 = jnp.maximum(acc1, 0.0)
    # dropout1: identity in eval mode.
    hbuf[pl.ds(pad_off, TL), :] = h1.astype(hbuf.dtype)

    # ---- conv2 (dilated, causal) + bias + relu -------------------------------
    acc2 = jnp.broadcast_to(b2, (TL, Cout_p))
    for j in range(k):
        acc2 = acc2 + jnp.dot(hbuf[pl.ds(halo + j * dilation, TL), :],
                              w2_ref[j], preferred_element_type=jnp.float32)
    out = jnp.maximum(acc2, 0.0)
    # dropout2: identity in eval mode.

    # ---- residual path (from the same x block) + final relu ------------------
    if has_downsample:
        res = jnp.dot(x_ref[...], wd_ref[...],
                      preferred_element_type=jnp.float32) + b_ref[2:3, :]
    else:
        res = x_ref[...].astype(jnp.float32)
    o_ref[...] = jnp.maximum(out + res, 0.0).astype(o_ref.dtype)

    # ---- carry the causal halo forward to the next time tile -----------------
    if pad > 0:
        @pl.when(t + 1 < pl.num_programs(1))
        def _():
            xbuf[pl.ds(halo, pad), :] = xbuf[pl.ds(pad_off + TL - pad, pad), :]
            hbuf[pl.ds(halo, pad), :] = hbuf[pl.ds(pad_off + TL - pad, pad), :]


def temporal_block_cl(x_cl, w1, b1, w2, b2, wd, bd, *, dilation, padding,
                      compute_dtype=jnp.bfloat16, out_dtype=None,
                      time_tile=256):
    """Channels-last entry point. x_cl: (N, L, Cin).  Returns (N, L, Cout).

    time_tile tuning: ~256 (v5e / v7x), 512-1024 (v6e).
    """
    N, L, Cin = x_cl.shape
    Cout, Cin_w, k = w1.shape
    assert Cin_w == Cin
    assert padding == (k - 1) * dilation, "standard causal TCN padding required"
    has_downsample = wd is not None
    if not has_downsample:
        assert Cin == Cout, "identity residual requires n_inputs == n_outputs"
    if out_dtype is None:
        out_dtype = x_cl.dtype

    Cin_p = _round_up(Cin, 128)
    Cout_p = _round_up(Cout, 128)

    mult = 16 if jnp.dtype(compute_dtype).itemsize < 4 else 8
    if L <= time_tile:
        TL, Lpad = L, L
    else:
        TL = _round_up(min(time_tile, L), mult)
        Lpad = _round_up(L, TL)
    pad = padding
    pad_off = _round_up(pad, mult) if pad > 0 else 0

    # glue: dtype cast + zero-pad channels to 128 lanes (and time to a tile
    # multiple).  No HBM-materialized causally-padded copy of x.
    xp = jnp.pad(x_cl.astype(compute_dtype),
                 ((0, 0), (0, Lpad - L), (0, Cin_p - Cin)))

    def to_taps(w, cip, cop):
        # (Cout, Cin, k) -> (k, cip, cop) so that y[t] += x[t + j*d - pad] @ w[j]
        tw = jnp.transpose(w, (2, 1, 0)).astype(compute_dtype)
        return jnp.pad(tw, ((0, 0), (0, cip - tw.shape[1]),
                            (0, cop - tw.shape[2])))

    w1_t = to_taps(w1, Cin_p, Cout_p)
    w2_t = to_taps(w2, Cout_p, Cout_p)

    biases = [b1, b2] + ([bd] if has_downsample else [])
    b_all = jnp.stack([jnp.pad(b.astype(jnp.float32), (0, Cout_p - Cout))
                       for b in biases])                       # (2|3, Cout_p)

    in_specs = [
        pl.BlockSpec((None, TL, Cin_p), lambda n, t: (n, t, 0)),    # x tile
        pl.BlockSpec((k, Cin_p, Cout_p), lambda n, t: (0, 0, 0)),   # w1 taps
        pl.BlockSpec((k, Cout_p, Cout_p), lambda n, t: (0, 0, 0)),  # w2 taps
        pl.BlockSpec((len(biases), Cout_p), lambda n, t: (0, 0)),   # biases
    ]
    args = [xp, w1_t, w2_t, b_all]
    if has_downsample:
        wd_m = jnp.pad(wd[:, :, 0].T.astype(compute_dtype),
                       ((0, Cin_p - Cin), (0, Cout_p - Cout)))
        in_specs.append(pl.BlockSpec((Cin_p, Cout_p), lambda n, t: (0, 0)))
        args.append(wd_m)

    kern = functools.partial(
        temporal_block_kernel, TL=TL, k=k, dilation=dilation, pad=pad,
        pad_off=pad_off, has_downsample=has_downsample)

    out_p = pl.pallas_call(
        kern,
        out_shape=jax.ShapeDtypeStruct((N, Lpad, Cout_p), out_dtype),
        grid_spec=pltpu.PrefetchScalarGridSpec(
            num_scalar_prefetch=0,
            grid=(N, Lpad // TL),
            in_specs=in_specs,
            out_specs=pl.BlockSpec((None, TL, Cout_p), lambda n, t: (n, t, 0)),
            scratch_shapes=[
                pltpu.VMEM((pad_off + TL, Cin_p), compute_dtype),   # x + halo
                pltpu.VMEM((pad_off + TL, Cout_p), compute_dtype),  # h1 + halo
            ],
        ),
        compiler_params=pltpu.CompilerParams(
            dimension_semantics=("parallel", "arbitrary")),
    )(*args)

    return out_p[:, :L, :Cout]


def temporal_block(x, w1, b1, w2, b2, wd, bd, *, dilation, padding,
                   compute_dtype=jnp.bfloat16, out_dtype=None, time_tile=256):
    """PyTorch-layout entry point. x: (N, Cin, L).  Returns (N, Cout, L).

    NOTE: if the surrounding model is channels-last already, use
    `temporal_block_cl` and drop both transposes (they are full HBM passes).
    """
    x_cl = jnp.transpose(x, (0, 2, 1))
    out_cl = temporal_block_cl(x_cl, w1, b1, w2, b2, wd, bd,
                               dilation=dilation, padding=padding,
                               compute_dtype=compute_dtype,
                               out_dtype=out_dtype, time_tile=time_tile)
    return jnp.transpose(out_cl, (0, 2, 1))


# ------------------------- pure-JAX reference (for verification) --------------
def _ref_forward(x, w1, b1, w2, b2, wd, bd, dilation, padding):
    def conv1d(inp, w, b, pad, dil):
        y = lax.conv_general_dilated(
            inp, w, window_strides=(1,), padding=[(pad, pad)],
            rhs_dilation=(dil,), dimension_numbers=("NCH", "OIH", "NCH"))
        return y + b[None, :, None]

    h = jax.nn.relu(conv1d(x, w1, b1, padding, dilation)[:, :, :-padding])
    h = jax.nn.relu(conv1d(h, w2, b2, padding, dilation)[:, :, :-padding])
    res = x if wd is None else conv1d(x, wd, bd, 0, 1)
    return jax.nn.relu(h + res)


def _weight_norm(v):
    # torch.nn.utils.parametrizations.weight_norm at init: w == v
    n = jnp.sqrt(jnp.sum(v * v, axis=(1, 2), keepdims=True))
    return n * v / n


if __name__ == "__main__":
    key = jax.random.PRNGKey(0)
    ks = jax.random.split(key, 12)

    # ---- config A: downsample residual (Cin != Cout), several time tiles ----
    N, Cin, Cout, L, K, dil = 2, 4, 8, 30, 3, 2
    pad = (K - 1) * dil
    x = jax.random.normal(ks[0], (N, Cin, L), jnp.float32)
    w1 = _weight_norm(0.01 * jax.random.normal(ks[1], (Cout, Cin, K), jnp.float32))
    b1 = 0.01 * jax.random.normal(ks[2], (Cout,), jnp.float32)
    w2 = _weight_norm(0.01 * jax.random.normal(ks[3], (Cout, Cout, K), jnp.float32))
    b2 = 0.01 * jax.random.normal(ks[4], (Cout,), jnp.float32)
    wd = 0.01 * jax.random.normal(ks[5], (Cout, Cin, 1), jnp.float32)
    bd = 0.01 * jax.random.normal(ks[6], (Cout,), jnp.float32)

    ref = _ref_forward(x, w1, b1, w2, b2, wd, bd, dil, pad)

    out_f32 = jax.block_until_ready(temporal_block(
        x, w1, b1, w2, b2, wd, bd, dilation=dil, padding=pad,
        compute_dtype=jnp.float32, time_tile=8))
    assert out_f32.shape == (N, Cout, L)
    assert jnp.allclose(out_f32, ref, rtol=1e-5, atol=1e-5), \
        f"f32 max err = {jnp.max(jnp.abs(out_f32 - ref))}"

    out_bf16 = jax.block_until_ready(temporal_block(
        x, w1, b1, w2, b2, wd, bd, dilation=dil, padding=pad,
        compute_dtype=jnp.bfloat16, time_tile=8))
    assert jnp.allclose(out_bf16, ref, rtol=2e-2, atol=1e-2), \
        f"bf16 max err = {jnp.max(jnp.abs(out_bf16 - ref))}"

    # ---- config B: identity residual (Cin == Cout), single time tile --------
    N2, C2, L2, K2, dil2 = 2, 8, 16, 3, 1
    pad2 = (K2 - 1) * dil2
    x2 = jax.random.normal(ks[7], (N2, C2, L2), jnp.float32)
    w1b = _weight_norm(0.01 * jax.random.normal(ks[8], (C2, C2, K2), jnp.float32))
    b1b = 0.01 * jax.random.normal(ks[9], (C2,), jnp.float32)
    w2b = _weight_norm(0.01 * jax.random.normal(ks[10], (C2, C2, K2), jnp.float32))
    b2b = 0.01 * jax.random.normal(ks[11], (C2,), jnp.float32)

    ref2 = _ref_forward(x2, w1b, b1b, w2b, b2b, None, None, dil2, pad2)
    out2 = jax.block_until_ready(temporal_block(
        x2, w1b, b1b, w2b, b2b, None, None, dilation=dil2, padding=pad2,
        compute_dtype=jnp.float32))
    assert out2.shape == (N2, C2, L2)
    assert jnp.allclose(out2, ref2, rtol=1e-5, atol=1e-5), \
        f"f32 max err = {jnp.max(jnp.abs(out2 - ref2))}"

    print("KERNEL_OK")
</pallas_src>

<mosaic_0001>
module attributes {stable_mosaic.version = 11 : i64} {
  func.func @temporal_block_kernel(%arg0: i32, %arg1: i32, %arg2: memref<1x8x128xf32, #tpu.memory_space<vmem>>, %arg3: memref<3x128x128xf32, #tpu.memory_space<vmem>>, %arg4: memref<3x128x128xf32, #tpu.memory_space<vmem>>, %arg5: memref<3x128xf32, #tpu.memory_space<vmem>>, %arg6: memref<128x128xf32, #tpu.memory_space<vmem>>, %arg7: memref<1x8x128xf32, #tpu.memory_space<vmem>>, %arg8: memref<16x128xf32, #tpu.memory_space<vmem>>, %arg9: memref<16x128xf32, #tpu.memory_space<vmem>>) attributes {dimension_semantics = [#tpu.dimension_semantics<parallel>, #tpu.dimension_semantics<arbitrary>], iteration_bounds = array<i64: 2, 4>, scalar_prefetch = 0 : i64, scratch_operands = 2 : i64, tpu.core_type = #tpu.core_type<tc>, window_params = [{transform_indices = @transform_0, window_bounds = array<i64: 1, 8, 128>}, {pipeline_mode = #tpu.pipeline_mode<synchronous>, transform_indices = @transform_1, window_bounds = array<i64: 3, 128, 128>}, {pipeline_mode = #tpu.pipeline_mode<synchronous>, transform_indices = @transform_2, window_bounds = array<i64: 3, 128, 128>}, {pipeline_mode = #tpu.pipeline_mode<synchronous>, transform_indices = @transform_3, window_bounds = array<i64: 3, 128>}, {pipeline_mode = #tpu.pipeline_mode<synchronous>, transform_indices = @transform_4, window_bounds = array<i64: 128, 128>}, {transform_indices = @transform_5, window_bounds = array<i64: 1, 8, 128>}]} {
    %c0_i32 = arith.constant 0 : i32
    %0 = arith.cmpi eq, %arg1, %c0_i32 : i32
    %1 = arith.extui %0 : i1 to i32
    %c0_i32_0 = arith.constant 0 : i32
    %2 = arith.cmpi ne, %1, %c0_i32_0 : i32
    scf.if %2 {
      %cst_56 = arith.constant 0.000000e+00 : f32
      %64 = vector.broadcast %cst_56 : f32 to vector<4x128xf32>
      %c4_57 = arith.constant 4 : index
      %c0_58 = arith.constant 0 : index
      %65 = vector.load %arg8[%c4_57, %c0_58] : memref<16x128xf32, #tpu.memory_space<vmem>>, vector<4x128xf32>
      tpu.vector_store %arg8[%c4_57, %c0_58], %64 {strides = array<i32>} : memref<16x128xf32, #tpu.memory_space<vmem>>, vector<4x128xf32>,
      %cst_59 = arith.constant 0.000000e+00 : f32
      %66 = vector.broadcast %cst_59 : f32 to vector<4x128xf32>
      %c4_60 = arith.constant 4 : index
      %c0_61 = arith.constant 0 : index
      %67 = vector.load %arg9[%c4_60, %c0_61] : memref<16x128xf32, #tpu.memory_space<vmem>>, vector<4x128xf32>
      tpu.vector_store %arg9[%c4_60, %c0_61], %66 {strides = array<i32>} : memref<16x128xf32, #tpu.memory_space<vmem>>, vector<4x128xf32>,
    } else {
    }
    %c0 = arith.constant 0 : index
    %c0_1 = arith.constant 0 : index
    %c0_2 = arith.constant 0 : index
    %3 = vector.load %arg2[%c0, %c0_1, %c0_2] : memref<1x8x128xf32, #tpu.memory_space<vmem>>, vector<1x8x128xf32>
    %4 = vector.shape_cast %3 : vector<1x8x128xf32> to vector<8x128xf32>
    %c8 = arith.constant 8 : index
    %c0_3 = arith.constant 0 : index
    %5 = vector.load %arg8[%c8, %c0_3] : memref<16x128xf32, #tpu.memory_space<vmem>>, vector<8x128xf32>
    tpu.vector_store %arg8[%c8, %c0_3], %4 {strides = array<i32>} : memref<16x128xf32, #tpu.memory_space<vmem>>, vector<8x128xf32>,
    %c0_4 = arith.constant 0 : index
    %c0_5 = arith.constant 0 : index
    %6 = vector.load %arg5[%c0_4, %c0_5] : memref<3x128xf32, #tpu.memory_space<vmem>>, vector<1x128xf32>
    %c1 = arith.constant 1 : index
    %c0_6 = arith.constant 0 : index
    %7 = vector.load %arg5[%c1, %c0_6] : memref<3x128xf32, #tpu.memory_space<vmem>>, vector<1x128xf32>
    %8 = vector.shape_cast %6 : vector<1x128xf32> to vector<1x128xf32>
    %9 = vector.broadcast %8 : vector<1x128xf32> to vector<8x128xf32>
    %c4 = arith.constant 4 : index
    %c0_7 = arith.constant 0 : index
    %10 = vector.load %arg8[%c4, %c0_7] : memref<16x128xf32, #tpu.memory_space<vmem>>, vector<8x128xf32>
    %c0_8 = arith.constant 0 : index
    %c0_9 = arith.constant 0 : index
    %c0_10 = arith.constant 0 : index
    %11 = vector.load %arg3[%c0_8, %c0_9, %c0_10] : memref<3x128x128xf32, #tpu.memory_space<vmem>>, vector<1x128x128xf32>
    %12 = vector.shape_cast %11 : vector<1x128x128xf32> to vector<128x128xf32>
    %cst = arith.constant dense<0.000000e+00> : vector<8x128xf32>
    %13 = tpu.matmul %10, %12, %cst {dimension_numbers = #tpu.dot_dimension_numbers<[1], [0], [0], [1], [0, 0, 1, 1], [], []>} : vector<8x128xf32>, vector<128x128xf32>, vector<8x128xf32> -> vector<8x128xf32>
    %14 = arith.addf %9, %13 : vector<8x128xf32>
    %c6 = arith.constant 6 : index
    %c0_11 = arith.constant 0 : index
    %15 = vector.load %arg8[%c6, %c0_11] : memref<16x128xf32, #tpu.memory_space<vmem>>, vector<8x128xf32>
    %c1_12 = arith.constant 1 : index
    %c0_13 = arith.constant 0 : index
    %c0_14 = arith.constant 0 : index
    %16 = vector.load %arg3[%c1_12, %c0_13, %c0_14] : memref<3x128x128xf32, #tpu.memory_space<vmem>>, vector<1x128x128xf32>
    %17 = vector.shape_cast %16 : vector<1x128x128xf32> to vector<128x128xf32>
    %cst_15 = arith.constant dense<0.000000e+00> : vector<8x128xf32>
    %18 = tpu.matmul %15, %17, %cst_15 {dimension_numbers = #tpu.dot_dimension_numbers<[1], [0], [0], [1], [0, 0, 1, 1], [], []>} : vector<8x128xf32>, vector<128x128xf32>, vector<8x128xf32> -> vector<8x128xf32>
    %19 = arith.addf %14, %18 : vector<8x128xf32>
    %c8_16 = arith.constant 8 : index
    %c0_17 = arith.constant 0 : index
    %20 = vector.load %arg8[%c8_16, %c0_17] : memref<16x128xf32, #tpu.memory_space<vmem>>, vector<8x128xf32>
    %c2 = arith.constant 2 : index
    %c0_18 = arith.constant 0 : index
    %c0_19 = arith.constant 0 : index
    %21 = vector.load %arg3[%c2, %c0_18, %c0_19] : memref<3x128x128xf32, #tpu.memory_space<vmem>>, vector<1x128x128xf32>
    %22 = vector.shape_cast %21 : vector<1x128x128xf32> to vector<128x128xf32>
    %cst_20 = arith.constant dense<0.000000e+00> : vector<8x128xf32>
    %23 = tpu.matmul %20, %22, %cst_20 {dimension_numbers = #tpu.dot_dimension_numbers<[1], [0], [0], [1], [0, 0, 1, 1], [], []>} : vector<8x128xf32>, vector<128x128xf32>, vector<8x128xf32> -> vector<8x128xf32>
    %24 = arith.addf %19, %23 : vector<8x128xf32>
    %cst_21 = arith.constant 0.000000e+00 : f32
    %25 = vector.broadcast %cst_21 : f32 to vector<8x128xf32>
    %26 = arith.maximumf %24, %25 : vector<8x128xf32>
    %c8_22 = arith.constant 8 : index
    %c0_23 = arith.constant 0 : index
    %27 = vector.load %arg9[%c8_22, %c0_23] : memref<16x128xf32, #tpu.memory_space<vmem>>, vector<8x128xf32>
    tpu.vector_store %arg9[%c8_22, %c0_23], %26 {strides = array<i32>} : memref<16x128xf32, #tpu.memory_space<vmem>>, vector<8x128xf32>,
    %28 = vector.shape_cast %7 : vector<1x128xf32> to vector<1x128xf32>
    %29 = vector.broadcast %28 : vector<1x128xf32> to vector<8x128xf32>
    %c4_24 = arith.constant 4 : index
    %c0_25 = arith.constant 0 : index
    %30 = vector.load %arg9[%c4_24, %c0_25] : memref<16x128xf32, #tpu.memory_space<vmem>>, vector<8x128xf32>
    %c0_26 = arith.constant 0 : index
    %c0_27 = arith.constant 0 : index
    %c0_28 = arith.constant 0 : index
    %31 = vector.load %arg4[%c0_26, %c0_27, %c0_28] : memref<3x128x128xf32, #tpu.memory_space<vmem>>, vector<1x128x128xf32>
    %32 = vector.shape_cast %31 : vector<1x128x128xf32> to vector<128x128xf32>
    %cst_29 = arith.constant dense<0.000000e+00> : vector<8x128xf32>
    %33 = tpu.matmul %30, %32, %cst_29 {dimension_numbers = #tpu.dot_dimension_numbers<[1], [0], [0], [1], [0, 0, 1, 1], [], []>} : vector<8x128xf32>, vector<128x128xf32>, vector<8x128xf32> -> vector<8x128xf32>
    %34 = arith.addf %29, %33 : vector<8x128xf32>
    %c6_30 = arith.constant 6 : index
    %c0_31 = arith.constant 0 : index
    %35 = vector.load %arg9[%c6_30, %c0_31] : memref<16x128xf32, #tpu.memory_space<vmem>>, vector<8x128xf32>
    %c1_32 = arith.constant 1 : index
    %c0_33 = arith.constant 0 : index
    %c0_34 = arith.constant 0 : index
    %36 = vector.load %arg4[%c1_32, %c0_33, %c0_34] : memref<3x128x128xf32, #tpu.memory_space<vmem>>, vector<1x128x128xf32>
    %37 = vector.shape_cast %36 : vector<1x128x128xf32> to vector<128x128xf32>
    %cst_35 = arith.constant dense<0.000000e+00> : vector<8x128xf32>
    %38 = tpu.matmul %35, %37, %cst_35 {dimension_numbers = #tpu.dot_dimension_numbers<[1], [0], [0], [1], [0, 0, 1, 1], [], []>} : vector<8x128xf32>, vector<128x128xf32>, vector<8x128xf32> -> vector<8x128xf32>
    %39 = arith.addf %34, %38 : vector<8x128xf32>
    %c8_36 = arith.constant 8 : index
    %c0_37 = arith.constant 0 : index
    %40 = vector.load %arg9[%c8_36, %c0_37] : memref<16x128xf32, #tpu.memory_space<vmem>>, vector<8x128xf32>
    %c2_38 = arith.constant 2 : index
    %c0_39 = arith.constant 0 : index
    %c0_40 = arith.constant 0 : index
    %41 = vector.load %arg4[%c2_38, %c0_39, %c0_40] : memref<3x128x128xf32, #tpu.memory_space<vmem>>, vector<1x128x128xf32>
    %42 = vector.shape_cast %41 : vector<1x128x128xf32> to vector<128x128xf32>
    %cst_41 = arith.constant dense<0.000000e+00> : vector<8x128xf32>
    %43 = tpu.matmul %40, %42, %cst_41 {dimension_numbers = #tpu.dot_dimension_numbers<[1], [0], [0], [1], [0, 0, 1, 1], [], []>} : vector<8x128xf32>, vector<128x128xf32>, vector<8x128xf32> -> vector<8x128xf32>
    %44 = arith.addf %39, %43 : vector<8x128xf32>
    %cst_42 = arith.constant 0.000000e+00 : f32
    %45 = vector.broadcast %cst_42 : f32 to vector<8x128xf32>
    %46 = arith.maximumf %44, %45 : vector<8x128xf32>
    %c0_43 = arith.constant 0 : index
    %c0_44 = arith.constant 0 : index
    %c0_45 = arith.constant 0 : index
    %47 = vector.load %arg2[%c0_43, %c0_44, %c0_45] : memref<1x8x128xf32, #tpu.memory_space<vmem>>, vector<1x8x128xf32>
    %48 = vector.shape_cast %47 : vector<1x8x128xf32> to vector<8x128xf32>
    %c0_46 = arith.constant 0 : index
    %c0_47 = arith.constant 0 : index
    %49 = vector.load %arg6[%c0_46, %c0_47] : memref<128x128xf32, #tpu.memory_space<vmem>>, vector<128x128xf32>
    %cst_48 = arith.constant dense<0.000000e+00> : vector<8x128xf32>
    %50 = tpu.matmul %48, %49, %cst_48 {dimension_numbers = #tpu.dot_dimension_numbers<[1], [0], [0], [1], [0, 0, 1, 1], [], []>} : vector<8x128xf32>, vector<128x128xf32>, vector<8x128xf32> -> vector<8x128xf32>
    %c2_49 = arith.constant 2 : index
    %c0_50 = arith.constant 0 : index
    %51 = vector.load %arg5[%c2_49, %c0_50] : memref<3x128xf32, #tpu.memory_space<vmem>>, vector<1x128xf32>
    %52 = vector.broadcast %51 : vector<1x128xf32> to vector<8x128xf32>
    %53 = arith.addf %50, %52 : vector<8x128xf32>
    %54 = arith.addf %46, %53 : vector<8x128xf32>
    %cst_51 = arith.constant 0.000000e+00 : f32
    %55 = vector.broadcast %cst_51 : f32 to vector<8x128xf32>
    %56 = arith.maximumf %54, %55 : vector<8x128xf32>
    %c0_52 = arith.constant 0 : index
    %c0_53 = arith.constant 0 : index
    %c0_54 = arith.constant 0 : index
    %57 = vector.load %arg7[%c0_52, %c0_53, %c0_54] : memref<1x8x128xf32, #tpu.memory_space<vmem>>, vector<1x8x128xf32>
    %58 = vector.shape_cast %57 : vector<1x8x128xf32> to vector<8x128xf32>
    %59 = vector.shape_cast %56 : vector<8x128xf32> to vector<1x8x128xf32>
    tpu.vector_store %arg7[%c0_52, %c0_53, %c0_54], %59 {strides = array<i32>} : memref<1x8x128xf32, #tpu.memory_space<vmem>>, vector<1x8x128xf32>,
    %c1_i32 = arith.constant 1 : i32
    %60 = arith.addi %arg1, %c1_i32 : i32
    %c4_i32 = arith.constant 4 : i32
    %61 = arith.cmpi slt, %60, %c4_i32 : i32
    %62 = arith.extui %61 : i1 to i32
    %c0_i32_55 = arith.constant 0 : i32
    %63 = arith.cmpi ne, %62, %c0_i32_55 : i32
    scf.if %63 {
      %c12 = arith.constant 12 : index
      %c0_56 = arith.constant 0 : index
      %64 = vector.load %arg8[%c12, %c0_56] : memref<16x128xf32, #tpu.memory_space<vmem>>, vector<4x128xf32>
      %c4_57 = arith.constant 4 : index
      %c0_58 = arith.constant 0 : index
      %65 = vector.load %arg8[%c4_57, %c0_58] : memref<16x128xf32, #tpu.memory_space<vmem>>, vector<4x128xf32>
      tpu.vector_store %arg8[%c4_57, %c0_58], %64 {strides = array<i32>} : memref<16x128xf32, #tpu.memory_space<vmem>>, vector<4x128xf32>,
      %c12_59 = arith.constant 12 : index
      %c0_60 = arith.constant 0 : index
      %66 = vector.load %arg9[%c12_59, %c0_60] : memref<16x128xf32, #tpu.memory_space<vmem>>, vector<4x128xf32>
      %c4_61 = arith.constant 4 : index
      %c0_62 = arith.constant 0 : index
      %67 = vector.load %arg9[%c4_61, %c0_62] : memref<16x128xf32, #tpu.memory_space<vmem>>, vector<4x128xf32>
      tpu.vector_store %arg9[%c4_61, %c0_62], %66 {strides = array<i32>} : memref<16x128xf32, #tpu.memory_space<vmem>>, vector<4x128xf32>,
    } else {
    }
    return
  }
  func.func @transform_0(%arg0: i32, %arg1: i32) -> (i32, i32, i32) {
    %c0_i32 = arith.constant 0 : i32
    %c0_i32_0 = arith.constant 0 : i32
    return %arg0, %arg1, %c0_i32 : i32, i32, i32
  }
  func.func @transform_1(%arg0: i32, %arg1: i32) -> (i32, i32, i32) {
    %c0_i32 = arith.constant 0 : i32
    %c0_i32_0 = arith.constant 0 : i32
    %c0_i32_1 = arith.constant 0 : i32
    %c0_i32_2 = arith.constant 0 : i32
    return %c0_i32, %c0_i32_0, %c0_i32_1 : i32, i32, i32
  }
  func.func @transform_2(%arg0: i32, %arg1: i32) -> (i32, i32, i32) {
    %c0_i32 = arith.constant 0 : i32
    %c0_i32_0 = arith.constant 0 : i32
    %c0_i32_1 = arith.constant 0 : i32
    %c0_i32_2 = arith.constant 0 : i32
    return %c0_i32, %c0_i32_0, %c0_i32_1 : i32, i32, i32
  }
  func.func @transform_3(%arg0: i32, %arg1: i32) -> (i32, i32) {
    %c0_i32 = arith.constant 0 : i32
    %c0_i32_0 = arith.constant 0 : i32
    %c0_i32_1 = arith.constant 0 : i32
    return %c0_i32, %c0_i32_0 : i32, i32
  }
  func.func @transform_4(%arg0: i32, %arg1: i32) -> (i32, i32) {
    %c0_i32 = arith.constant 0 : i32
    %c0_i32_0 = arith.constant 0 : i32
    %c0_i32_1 = arith.constant 0 : i32
    return %c0_i32, %c0_i32_0 : i32, i32
  }
  func.func @transform_5(%arg0: i32, %arg1: i32) -> (i32, i32, i32) {
    %c0_i32 = arith.constant 0 : i32
    %c0_i32_0 = arith.constant 0 : i32
    return %arg0, %arg1, %c0_i32 : i32, i32, i32
  }
}

</mosaic_0001>

<llo_original>
// kernel: tpu_custom_call.1
$region0: #{tpu_custom_call.1}
  #allocation0 [shape = 'u32[]', space=smem, size = 0x4, offset = 0x4, fixed_abs, tag = 'smem constant byte address 0x4 - core index']
  #allocation1 [shape = 'u32[144,128]{1,0:T(1,128)}', space=vmem, size = 0x12000, scoped, tag = 'internal scratch']
  #allocation2 [shape = 'f32[16,128]{1,0:T(8,128)}', space=vmem, size = 0x2000, scoped, tag = 'scratch operand']
  #allocation3 [shape = 'f32[16,128]{1,0:T(8,128)}', space=vmem, size = 0x2000, scoped, tag = 'scratch operand']
  %s0 = inlined_call_operand.hbm [shape: f32[2,32,128], index: 0, kind: input, shape index: {}]
  %s1 = inlined_call_operand.hbm [shape: f32[3,128,128], index: 1, kind: input, shape index: {}]
  %s2 = inlined_call_operand.hbm [shape: f32[3,128,128], index: 2, kind: input, shape index: {}]
  %s3 = inlined_call_operand.vmem [shape: f32[3,128], index: 3, kind: input, shape index: {}]
  %s4 = inlined_call_operand.hbm [shape: f32[128,128], index: 4, kind: input, shape index: {}]
  %s5 = inlined_call_operand.hbm [shape: f32[2,32,128], index: 5, kind: output, shape index: {}]
  %s6 = sld [smem:[#allocation0]]
  $region77: #{tpu_custom_call.1} parent=0
    _
  %s8 = ssub.s32 1, %s6
  %s9 = scalar_select 0, %s8, %s6
  $region1: #{tpu_custom_call.1} parent=0
    #allocation4 [shape = 'u8[8192]{0}', space=vmem, size = 0x2000, scoped, tag = 'input window, operand 0']
    #allocation5 [shape = 's32[2]{0}', space=sflag, size = 0x8, scoped, tag = 'scoped memory for tpu_custom_call.1']
    #allocation6 [shape = 's32[2]{0}', space=sflag, size = 0x8, scoped, tag = 'scoped memory for tpu_custom_call.1']
    #allocation7 [shape = 'u8[196608]{0}', space=vmem, size = 0x30000, scoped, tag = 'input window, operand 1, single buffered']
    #allocation8 [shape = 's32[1]{0}', space=sflag, size = 0x4, scoped, tag = 'scoped memory for tpu_custom_call.1']
    #allocation9 [shape = 'u8[196608]{0}', space=vmem, size = 0x30000, scoped, tag = 'input window, operand 2, single buffered']
    #allocation10 [shape = 'u8[65536]{0}', space=vmem, size = 0x10000, scoped, tag = 'input window, operand 4, single buffered']
    #allocation11 [shape = 's32[1]{0}', space=sflag, size = 0x4, scoped, tag = 'scoped memory for tpu_custom_call.1']
    #allocation12 [shape = 'u8[8192]{0}', space=vmem, size = 0x2000, scoped, tag = 'output window, operand 0']
    %10 = vsyncpa [#allocation5], 0
    %s11 = scalar_lea.sflag [#allocation5], 1
    %12 = vsyncpa %s11, 0
    %13 = vsyncpa [#allocation8], 0
    %14 = vsyncpa [#allocation11], 0
    %15 = vsyncpa [#allocation6], 0
    %s16 = scalar_lea.sflag [#allocation6], 1
    %17 = vsyncpa %s16, 0
    loop: start=0, step=1, limit=10
    $region2: #{tpu_custom_call.1} parent=1 // loop_pre_header
      _
    $region3: #{tpu_custom_call.1} parent=1 // loop_header
      %s19 = sphi 0, %s23
      %p20 = scmp.ge.s32.totalorder %s19, 10
      %s26 = sphi 0, %s38
      %s27 = sphi 0, %s34
      %s28 = sphi 0, %s26
      %s29 = sphi 0, %s27
      %s30 = sphi 0, %s28
      %s31 = sphi 0, %s29
      %s43 = sphi 0, %s45
      %s46 = sphi 0, %s43
      %s47 = sphi 0, %s46
      %s63 = sphi 0, %s47
      %s67 = sphi 0, %s67
      %s69 = sphi 0, %s67
      %s70 = sphi 0, %s69
      %s84 = sphi 0, %s70
      %s88 = sphi 0, %s88
      %s90 = sphi 0, %s88
      %s91 = sphi 0, %s90
      %s105 = sphi 0, %s91
      %s109 = sphi 0, %s109
      %s111 = sphi 0, %s109
      %s112 = sphi 0, %s111
      %s126 = sphi 0, %s112
      %s130 = sphi 0, %s130
      %s132 = sphi 0, %s130
      %s133 = sphi 0, %s132
      %s147 = sphi 0, %s133
      %s155 = sphi 0, %s157
      %s158 = sphi 0, %s155
      %s159 = sphi 0, %s158
      %s175 = sphi 0, %s159
    $region4: #{tpu_custom_call.1} parent=1 // loop_header_branch
      %22 = sbr.rel (%p20) target = $region8
    $region5: #{tpu_custom_call.1} parent=1 // loop_body
      %s24 = ssub.s32 %s19, 1
      %s25 = ssub.s32 %s19, 2
      %s32 = sadd.s32 1, %s27
      %p33 = scmp.ge.s32.totalorder %s32, 4
      %s34 = scalar_select %p33, 0, %s32
      %s35 = sadd.s32 1, %s26
      %s36 = scalar_select %p33, %s35, %s26
      %p37 = scmp.ge.s32.totalorder %s36, 2
      %s38 = scalar_select %p37, 0, %s36
      %s39 = ssub.s32 %s26, %s38
      %s40 = ssub.s32 %s27, %s34
      %s41 = sor.u32 %s39, %s40
      %p42 = scmp.eq.s32.totalorder %s41, 0
      %s44 = sadd.s32 %s43, 1
      %s45 = scalar_select %p42, %s43, %s44
      %p48 = pneg %p42
      %p49 = scmp.eq.s32.totalorder %s19, 7
      %p50 = por %p48, %p49
      %p51 = scmp.ne.s32.totalorder %s43, %s46
      %p52 = scmp.eq.s32.totalorder %s19, 0
      %p53 = por %p51, %p52
      %p54 = scmp.ne.s32.totalorder %s43, %s46
      %p55 = scmp.eq.s32.totalorder %s24, 7
      %p56 = por %p54, %p55
      %p57 = scmp.ne.s32.totalorder %s46, %s47
      %p58 = scmp.eq.s32.totalorder %s24, 0
      %p59 = por %p57, %p58
      %p60 = scmp.ne.s32.totalorder %s46, %s47
      %p61 = scmp.eq.s32.totalorder %s25, 7
      %p62 = por %p60, %p61
      %p64 = scmp.ne.s32.totalorder %s47, %s63
      %p65 = scmp.eq.s32.totalorder %s25, 0
      %p66 = por %p64, %p65
      %s68 = sadd.s32 %s67, 1
      %p71 = scmp.eq.s32.totalorder %s19, 7
      %p72 = scmp.ne.s32.totalorder %s67, %s69
      %p73 = scmp.eq.s32.totalorder %s19, 0
      %p74 = por %p72, %p73
      %p75 = scmp.ne.s32.totalorder %s67, %s69
      %p76 = scmp.eq.s32.totalorder %s24, 7
      %p77 = por %p75, %p76
      %p78 = scmp.ne.s32.totalorder %s69, %s70
      %p79 = scmp.eq.s32.totalorder %s24, 0
      %p80 = por %p78, %p79
      %p81 = scmp.ne.s32.totalorder %s69, %s70
      %p82 = scmp.eq.s32.totalorder %s25, 7
      %p83 = por %p81, %p82
      %p85 = scmp.ne.s32.totalorder %s70, %s84
      %p86 = scmp.eq.s32.totalorder %s25, 0
      %p87 = por %p85, %p86
      %s89 = sadd.s32 %s88, 1
      %p92 = scmp.eq.s32.totalorder %s19, 7
      %p93 = scmp.ne.s32.totalorder %s88, %s90
      %p94 = scmp.eq.s32.totalorder %s19, 0
      %p95 = por %p93, %p94
      %p96 = scmp.ne.s32.totalorder %s88, %s90
      %p97 = scmp.eq.s32.totalorder %s24, 7
      %p98 = por %p96, %p97
      %p99 = scmp.ne.s32.totalorder %s90, %s91
      %p100 = scmp.eq.s32.totalorder %s24, 0
      %p101 = por %p99, %p100
      %p102 = scmp.ne.s32.totalorder %s90, %s91
      %p103 = scmp.eq.s32.totalorder %s25, 7
      %p104 = por %p102, %p103
      %p106 = scmp.ne.s32.totalorder %s91, %s105
      %p107 = scmp.eq.s32.totalorder %s25, 0
      %p108 = por %p106, %p107
      %s110 = sadd.s32 %s109, 1
      %p113 = scmp.eq.s32.totalorder %s19, 7
      %p114 = scmp.ne.s32.totalorder %s109, %s111
      %p115 = scmp.eq.s32.totalorder %s19, 0
      %p116 = por %p114, %p115
      %p117 = scmp.ne.s32.totalorder %s109, %s111
      %p118 = scmp.eq.s32.totalorder %s24, 7
      %p119 = por %p117, %p118
      %p120 = scmp.ne.s32.totalorder %s111, %s112
      %p121 = scmp.eq.s32.totalorder %s24, 0
      %p122 = por %p120, %p121
      %p123 = scmp.ne.s32.totalorder %s111, %s112
      %p124 = scmp.eq.s32.totalorder %s25, 7
      %p125 = por %p123, %p124
      %p127 = scmp.ne.s32.totalorder %s112, %s126
      %p128 = scmp.eq.s32.totalorder %s25, 0
      %p129 = por %p127, %p128
      %s131 = sadd.s32 %s130, 1
      %p134 = scmp.eq.s32.totalorder %s19, 7
      %p135 = scmp.ne.s32.totalorder %s130, %s132
      %p136 = scmp.eq.s32.totalorder %s19, 0
      %p137 = por %p135, %p136
      %p138 = scmp.ne.s32.totalorder %s130, %s132
      %p139 = scmp.eq.s32.totalorder %s24, 7
      %p140 = por %p138, %p139
      %p141 = scmp.ne.s32.totalorder %s132, %s133
      %p142 = scmp.eq.s32.totalorder %s24, 0
      %p143 = por %p141, %p142
      %p144 = scmp.ne.s32.totalorder %s132, %s133
      %p145 = scmp.eq.s32.totalorder %s25, 7
      %p146 = por %p144, %p145
      %p148 = scmp.ne.s32.totalorder %s133, %s147
      %p149 = scmp.eq.s32.totalorder %s25, 0
      %p150 = por %p148, %p149
      %s151 = ssub.s32 %s26, %s38
      %s152 = ssub.s32 %s27, %s34
      %s153 = sor.u32 %s151, %s152
      %p154 = scmp.eq.s32.totalorder %s153, 0
      %s156 = sadd.s32 %s155, 1
      %s157 = scalar_select %p154, %s155, %s156
      %p160 = pneg %p154
      %p161 = scmp.eq.s32.totalorder %s19, 7
      %p162 = por %p160, %p161
      %p163 = scmp.ne.s32.totalorder %s155, %s158
      %p164 = scmp.eq.s32.totalorder %s19, 0
      %p165 = por %p163, %p164
      %p166 = scmp.ne.s32.totalorder %s155, %s158
      %p167 = scmp.eq.s32.totalorder %s24, 7
      %p168 = por %p166, %p167
      %p169 = scmp.ne.s32.totalorder %s158, %s159
      %p170 = scmp.eq.s32.totalorder %s24, 0
      %p171 = por %p169, %p170
      %p172 = scmp.ne.s32.totalorder %s158, %s159
      %p173 = scmp.eq.s32.totalorder %s25, 7
      %p174 = por %p172, %p173
      %p176 = scmp.ne.s32.totalorder %s159, %s175
      %p177 = scmp.eq.s32.totalorder %s25, 0
      %p178 = por %p176, %p177
      %p179 = scmp.le.s32.totalorder 1, %s19
      %p180 = scmp.lt.s32.totalorder %s19, 9
      %p181 = pnand %p179, %p180
      %p182 = pneg %p181
      // Predicated region
      $region9: #{tpu_custom_call.1} parent=5 // pred_check
        _
      $region10: #{tpu_custom_call.1} parent=5 // pred_check_branch
        %184 = sbr.rel (%p181) target = $region12
      $region11: #{tpu_custom_call.1} parent=5 // pred_region
        %s185 = ssub.s32 %s19, 1
        // Predicated region
        $region13: #{tpu_custom_call.1} parent=11 // pred_check
          %p186 = pneg %p80
        $region14: #{tpu_custom_call.1} parent=11 // pred_check_branch
          %188 = sbr.rel (%p186) target = $region16
        $region15: #{tpu_custom_call.1} parent=11 // pred_region
          %s190 = ssub.s32 6144, 6144
          %191 = vsyncadd [#allocation8], %s190
          %s192 = sshll.u32 [#allocation7], 4
          %s193 = int_to_ptr.vmem [resolvable:$true] %s192
          %198 = dma.hbm_to_vmem [thread:$0]  %s1, 6144, %s193, [#allocation8], 128, 128, 8
        $region16: #{tpu_custom_call.1} parent=11 // pred_fallthru
          _
        // Predicated region
        $region17: #{tpu_custom_call.1} parent=11 // pred_check
          %p199 = pneg %p101
        $region18: #{tpu_custom_call.1} parent=11 // pred_check_branch
          %201 = sbr.rel (%p199) target = $region20
        $region19: #{tpu_custom_call.1} parent=11 // pred_region
          %s203 = ssub.s32 6144, 6144
          %204 = vsyncadd [#allocation8], %s203
          %s205 = sshll.u32 [#allocation9], 4
          %s206 = int_to_ptr.vmem [resolvable:$true] %s205
          %211 = dma.hbm_to_vmem [thread:$0]  %s2, 6144, %s206, [#allocation8], 128, 128, 8
        $region20: #{tpu_custom_call.1} parent=11 // pred_fallthru
          _
        // Predicated region
        $region21: #{tpu_custom_call.1} parent=11 // pred_check
          %p212 = pneg %p122
        $region22: #{tpu_custom_call.1} parent=11 // pred_check_branch
          %214 = sbr.rel (%p212) target = $region24
        $region23: #{tpu_custom_call.1} parent=11 // pred_region
          _
        $region24: #{tpu_custom_call.1} parent=11 // pred_fallthru
          _
        // Predicated region
        $region25: #{tpu_custom_call.1} parent=11 // pred_check
          %p215 = pneg %p143
        $region26: #{tpu_custom_call.1} parent=11 // pred_check_branch
          %217 = sbr.rel (%p215) target = $region28
        $region27: #{tpu_custom_call.1} parent=11 // pred_region
          %s219 = ssub.s32 2048, 2048
          %220 = vsyncadd [#allocation11], %s219
          %s221 = sshll.u32 [#allocation10], 4
          %s222 = int_to_ptr.vmem [resolvable:$true] %s221
          %227 = dma.hbm_to_vmem [thread:$0]  %s4, 2048, %s222, [#allocation11], 128, 128, 8
        $region28: #{tpu_custom_call.1} parent=11 // pred_fallthru
          _
      $region12: #{tpu_custom_call.1} parent=5 // pred_fallthru
        _
      %p228 = scmp.lt.s32.totalorder %s19, 8
      // Predicated region
      $region29: #{tpu_custom_call.1} parent=5 // pred_check
        %p229 = pneg %p228
      $region30: #{tpu_custom_call.1} parent=5 // pred_check_branch
        %231 = sbr.rel (%p229) target = $region32
      $region31: #{tpu_custom_call.1} parent=5 // pred_region
        // Predicated region
        $region33: #{tpu_custom_call.1} parent=31 // pred_check
          %p232 = pneg %p53
        $region34: #{tpu_custom_call.1} parent=31 // pred_check_branch
          %234 = sbr.rel (%p232) target = $region36
        $region35: #{tpu_custom_call.1} parent=31 // pred_region
          %s235 = sand.u32 %s43, 1
          %s236 = scalar_lea.sflag [#allocation5], %s235
          %s237 = sand.u32 %s43, 1
          %s238 = smul.addr %s237, 8
          %s239 = scalar_lea.vmem [#allocation4], %s238
          %s241 = ssub.s32 128, 128
          %242 = vsyncadd %s236, %s241
          %s243 = smul.addr %s26, 4
          %s244 = sadd.s32 %s27, %s243
          %s245 = smul.addr %s244, 128
          %s246 = scalar_lea.hbm %s0, %s245
          %s248 = sshll.u32 %s239, 4
          %s249 = int_to_ptr.vmem [resolvable:$true] %s248
          %251 = dma.hbm_to_vmem [thread:$0]  %s246, 128, %s249, %s236
        $region36: #{tpu_custom_call.1} parent=31 // pred_fallthru
          _
      $region32: #{tpu_custom_call.1} parent=5 // pred_fallthru
        _
      %p252 = scmp.le.s32.totalorder 1, %s19
      %p253 = scmp.lt.s32.totalorder %s19, 9
      %p254 = pnand %p252, %p253
      %p255 = pneg %p254
      // Predicated region
      $region37: #{tpu_custom_call.1} parent=5 // pred_check
        _
      $region38: #{tpu_custom_call.1} parent=5 // pred_check_branch
        %257 = sbr.rel (%p254) target = $region40
      $region39: #{tpu_custom_call.1} parent=5 // pred_region
        %s258 = ssub.s32 %s19, 1
        %s259 = sand.u32 %s46, 1
        %s260 = scalar_lea.sflag [#allocation5], %s259
        %s261 = sand.u32 %s46, 1
        %s262 = smul.addr %s261, 8
        %s263 = scalar_lea.vmem [#allocation4], %s262
        // Predicated region
        $region41: #{tpu_custom_call.1} parent=39 // pred_check
          %p264 = pneg %p59
        $region42: #{tpu_custom_call.1} parent=39 // pred_check_branch
          %266 = sbr.rel (%p264) target = $region44
        $region43: #{tpu_custom_call.1} parent=39 // pred_region
          %267 = dma.done %s260, 128
        $region44: #{tpu_custom_call.1} parent=39 // pred_fallthru
          _
        // Predicated region
        $region45: #{tpu_custom_call.1} parent=39 // pred_check
          %p268 = pneg %p80
        $region46: #{tpu_custom_call.1} parent=39 // pred_check_branch
          %270 = sbr.rel (%p268) target = $region48
        $region47: #{tpu_custom_call.1} parent=39 // pred_region
          %271 = dma.done [#allocation8], 6144
        $region48: #{tpu_custom_call.1} parent=39 // pred_fallthru
          _
        // Predicated region
        $region49: #{tpu_custom_call.1} parent=39 // pred_check
          %p272 = pneg %p101
        $region50: #{tpu_custom_call.1} parent=39 // pred_check_branch
          %274 = sbr.rel (%p272) target = $region52
        $region51: #{tpu_custom_call.1} parent=39 // pred_region
          %275 = dma.done [#allocation8], 6144
        $region52: #{tpu_custom_call.1} parent=39 // pred_fallthru
          _
        // Predicated region
        $region53: #{tpu_custom_call.1} parent=39 // pred_check
          %p276 = pneg %p143
        $region54: #{tpu_custom_call.1} parent=39 // pred_check_branch
          %278 = sbr.rel (%p276) target = $region56
        $region55: #{tpu_custom_call.1} parent=39 // pred_region
          %279 = dma.done [#allocation11], 2048
        $region56: #{tpu_custom_call.1} parent=39 // pred_fallthru
          _
        %s280 = sand.u32 %s46, 1
        %s281 = scalar_lea.sflag [#allocation5], %s280
        %s282 = sand.u32 %s46, 1
        %s283 = smul.addr %s282, 8
        %s284 = scalar_lea.vmem [#allocation4], %s283
        %p285 = pneg %p59
        %p286 = pneg %p56
        %p287 = pneg %p80
        %p288 = pneg %p77
        %p289 = pneg %p101
        %p290 = pneg %p98
        %p291 = pneg %p122
        %p292 = pneg %p119
        %p293 = pneg %p143
        %p294 = pneg %p140
        %p295 = pneg %p171
        %p296 = pneg %p168
        %s297 = sand.u32 %s158, 1
        %s298 = scalar_lea.sflag [#allocation6], %s297
        %s299 = sand.u32 %s158, 1
        %s300 = smul.addr %s299, 8
        %s301 = scalar_lea.vmem [#allocation12], %s300
        %p302 = scmp.eq.s32.totalorder %s29, 0
        // Predicated region
        $region57: #{tpu_custom_call.1} parent=39 // pred_check
          %p303 = pneg %p302
        $region58: #{tpu_custom_call.1} parent=39 // pred_check_branch
          %305 = sbr.rel (%p303) target = $region60
        $region59: #{tpu_custom_call.1} parent=39 // pred_region
          %306 = vst [vmem:[#allocation2 + $0x4] sm:$0xf] 0.0
          %307 = vst [vmem:[#allocation3 + $0x4] sm:$0xf] 0.0
        $region60: #{tpu_custom_call.1} parent=39 // pred_fallthru
          _
        %v308 = vld [vmem:[%s263] sm:$0xff]
        %309 = vst [vmem:[#allocation2 + $0x8] sm:$0xff] %v308
        %v310 = vld [vmem:[%s3] sm:$0x1]
        %v311 = vld [vmem:[%s3 + $0x1] sm:$0x1]
        %v312 = vlaneseq
        %v313 = vshrl.u32 %v312, 7
        %v314 = vsub.s32 0, %v313
        %v315 = vrot.slane %v310, %v314
        %v316 = vld [vmem:[#allocation2 + $0x4] sm:$0xff]
        %v317 = vld [vmem:[#allocation7] sm:$0xff]
        %v318 = vld [vmem:[#allocation7 + $0x8] sm:$0xff]
        %v319 = vld [vmem:[#allocation7 + $0x10] sm:$0xff]
        %v320 = vld [vmem:[#allocation7 + $0x18] sm:$0xff]
        %v321 = vld [vmem:[#allocation7 + $0x20] sm:$0xff]
        %v322 = vld [vmem:[#allocation7 + $0x28] sm:$0xff]
        %v323 = vld [vmem:[#allocation7 + $0x30] sm:$0xff]
        %v324 = vld [vmem:[#allocation7 + $0x38] sm:$0xff]
        %v325 = vld [vmem:[#allocation7 + $0x40] sm:$0xff]
        %v326 = vld [vmem:[#allocation7 + $0x48] sm:$0xff]
        %v327 = vld [vmem:[#allocation7 + $0x50] sm:$0xff]
        %v328 = vld [vmem:[#allocation7 + $0x58] sm:$0xff]
        %v329 = vld [vmem:[#allocation7 + $0x60] sm:$0xff]
        %v330 = vld [vmem:[#allocation7 + $0x68] sm:$0xff]
        %v331 = vld [vmem:[#allocation7 + $0x70] sm:$0xff]
        %v332 = vld [vmem:[#allocation7 + $0x78] sm:$0xff]
        %333 = vmatprep.subr.mxu0 0.0
        %334 = vmatpush1.msra.mxu0 %v317
        %335 = vmatprep.subr.mxu0 0.0
        %336 = vmatpush1.msra.mxu0 %v318
        %337 = vmatprep.subr.mxu0 0.0
        %338 = vmatpush1.msra.mxu0 %v319
        %339 = vmatprep.subr.mxu0 0.0
        %340 = vmatpush1.msra.mxu0 %v320
        %341 = vmatprep.subr.mxu0 0.0
        %342 = vmatpush1.msra.mxu0 %v321
        %343 = vmatprep.subr.mxu0 0.0
        %344 = vmatpush1.msra.mxu0 %v322
        %345 = vmatprep.subr.mxu0 0.0
        %346 = vmatpush1.msra.mxu0 %v323
        %347 = vmatprep.subr.mxu0 0.0
        %348 = vmatpush1.msra.mxu0 %v324
        %349 = vmatprep.subr.mxu0 0.0
        %350 = vmatpush1.msra.mxu0 %v325
        %351 = vmatprep.subr.mxu0 0.0
        %352 = vmatpush1.msra.mxu0 %v326
        %353 = vmatprep.subr.mxu0 0.0
        %354 = vmatpush1.msra.mxu0 %v327
        %355 = vmatprep.subr.mxu0 0.0
        %356 = vmatpush1.msra.mxu0 %v328
        %357 = vmatprep.subr.mxu0 0.0
        %358 = vmatpush1.msra.mxu0 %v329
        %359 = vmatprep.subr.mxu0 0.0
        %360 = vmatpush1.msra.mxu0 %v330
        %361 = vmatprep.subr.mxu0 0.0
        %362 = vmatpush1.msra.mxu0 %v331
        %363 = vmatprep.subr.mxu0 0.0
        %364 = vmatpush1.msra.mxu0 %v332
        %365 = vmatprep.subr.mxu0 0.0
        %366 = vmatpush1.msra.mxu0 0.0
        %367 = vmatprep.subr.mxu0 0.0
        %368 = vmatpush1.msra.mxu0 0.0
        %369 = vmatprep.subr.mxu0 0.0
        %370 = vmatpush1.msra.mxu0 0.0
        %371 = vmatprep.subr.mxu0 0.0
        %372 = vmatpush1.msra.mxu0 0.0
        %373 = vmatprep.subr.mxu0 0.0
        %374 = vmatpush1.msra.mxu0 0.0
        %375 = vmatprep.subr.mxu0 0.0
        %376 = vmatpush1.msra.mxu0 0.0
        %377 = vmatprep.subr.mxu0 0.0
        %378 = vmatpush1.msra.mxu0 0.0
        %379 = vmatprep.subr.mxu0 0.0
        %380 = vmatpush1.msra.mxu0 0.0
        %381 = vmatprep.subr.mxu0 0.0
        %382 = vmatpush1.msra.mxu0 0.0
        %383 = vmatprep.subr.mxu0 0.0
        %384 = vmatpush1.msra.mxu0 0.0
        %385 = vmatprep.subr.mxu0 0.0
        %386 = vmatpush1.msra.mxu0 0.0
        %387 = vmatprep.subr.mxu0 0.0
        %388 = vmatpush1.msra.mxu0 0.0
        %389 = vmatprep.subr.mxu0 0.0
        %390 = vmatpush1.msra.mxu0 0.0
        %391 = vmatprep.subr.mxu0 0.0
        %392 = vmatpush1.msra.mxu0 0.0
        %393 = vmatprep.subr.mxu0 0.0
        %394 = vmatpush1.msra.mxu0 0.0
        %395 = vmatprep.subr.mxu0 0.0
        %396 = vmatpush1.msra.mxu0 0.0
        %397 = vmatprep.mubr.f32.mxu0 0.0
        %398 = vmatmul.mubr.f32.gmra.mrb[0].mxu0 %v316
        %v399 = vpop.f32.mrb[0].mxu0
        %v400 = vadd.f32 0.0, %v399
        %v401 = vpop.f32.mrb[0].mxu0
        %402 = vdwg.mxu0
        %v403 = vadd.f32 %v315, %v400
        %v404 = vld [vmem:[#allocation2 + $0x6] sm:$0xff]
        %s405 = scalar_lea.vmem [#allocation7], 128
        %v406 = vld [vmem:[%s405] sm:$0xff]
        %v407 = vld [vmem:[%s405 + $0x8] sm:$0xff]
        %v408 = vld [vmem:[%s405 + $0x10] sm:$0xff]
        %v409 = vld [vmem:[%s405 + $0x18] sm:$0xff]
        %v410 = vld [vmem:[%s405 + $0x20] sm:$0xff]
        %v411 = vld [vmem:[%s405 + $0x28] sm:$0xff]
        %v412 = vld [vmem:[%s405 + $0x30] sm:$0xff]
        %v413 = vld [vmem:[%s405 + $0x38] sm:$0xff]
        %v414 = vld [vmem:[%s405 + $0x40] sm:$0xff]
        %v415 = vld [vmem:[%s405 + $0x48] sm:$0xff]
        %v416 = vld [vmem:[%s405 + $0x50] sm:$0xff]
        %v417 = vld [vmem:[%s405 + $0x58] sm:$0xff]
        %v418 = vld [vmem:[%s405 + $0x60] sm:$0xff]
        %v419 = vld [vmem:[%s405 + $0x68] sm:$0xff]
        %v420 = vld [vmem:[%s405 + $0x70] sm:$0xff]
        %v421 = vld [vmem:[%s405 + $0x78] sm:$0xff]
        %422 = vmatprep.subr.mxu0 0.0
        %423 = vmatpush1.msra.mxu0 %v406
        %424 = vmatprep.subr.mxu0 0.0
        %425 = vmatpush1.msra.mxu0 %v407
        %426 = vmatprep.subr.mxu0 0.0
        %427 = vmatpush1.msra.mxu0 %v408
        %428 = vmatprep.subr.mxu0 0.0
        %429 = vmatpush1.msra.mxu0 %v409
        %430 = vmatprep.subr.mxu0 0.0
        %431 = vmatpush1.msra.mxu0 %v410
        %432 = vmatprep.subr.mxu0 0.0
        %433 = vmatpush1.msra.mxu0 %v411
        %434 = vmatprep.subr.mxu0 0.0
        %435 = vmatpush1.msra.mxu0 %v412
        %436 = vmatprep.subr.mxu0 0.0
        %437 = vmatpush1.msra.mxu0 %v413
        %438 = vmatprep.subr.mxu0 0.0
        %439 = vmatpush1.msra.mxu0 %v414
        %440 = vmatprep.subr.mxu0 0.0
        %441 = vmatpush1.msra.mxu0 %v415
        %442 = vmatprep.subr.mxu0 0.0
        %443 = vmatpush1.msra.mxu0 %v416
        %444 = vmatprep.subr.mxu0 0.0
        %445 = vmatpush1.msra.mxu0 %v417
        %446 = vmatprep.subr.mxu0 0.0
        %447 = vmatpush1.msra.mxu0 %v418
        %448 = vmatprep.subr.mxu0 0.0
        %449 = vmatpush1.msra.mxu0 %v419
        %450 = vmatprep.subr.mxu0 0.0
        %451 = vmatpush1.msra.mxu0 %v420
        %452 = vmatprep.subr.mxu0 0.0
        %453 = vmatpush1.msra.mxu0 %v421
        %454 = vmatprep.subr.mxu0 0.0
        %455 = vmatpush1.msra.mxu0 0.0
        %456 = vmatprep.subr.mxu0 0.0
        %457 = vmatpush1.msra.mxu0 0.0
        %458 = vmatprep.subr.mxu0 0.0
        %459 = vmatpush1.msra.mxu0 0.0
        %460 = vmatprep.subr.mxu0 0.0
        %461 = vmatpush1.msra.mxu0 0.0
        %462 = vmatprep.subr.mxu0 0.0
        %463 = vmatpush1.msra.mxu0 0.0
        %464 = vmatprep.subr.mxu0 0.0
        %465 = vmatpush1.msra.mxu0 0.0
        %466 = vmatprep.subr.mxu0 0.0
        %467 = vmatpush1.msra.mxu0 0.0
        %468 = vmatprep.subr.mxu0 0.0
        %469 = vmatpush1.msra.mxu0 0.0
        %470 = vmatprep.subr.mxu0 0.0
        %471 = vmatpush1.msra.mxu0 0.0
        %472 = vmatprep.subr.mxu0 0.0
        %473 = vmatpush1.msra.mxu0 0.0
        %474 = vmatprep.subr.mxu0 0.0
        %475 = vmatpush1.msra.mxu0 0.0
        %476 = vmatprep.subr.mxu0 0.0
        %477 = vmatpush1.msra.mxu0 0.0
        %478 = vmatprep.subr.mxu0 0.0
        %479 = vmatpush1.msra.mxu0 0.0
        %480 = vmatprep.subr.mxu0 0.0
        %481 = vmatpush1.msra.mxu0 0.0
        %482 = vmatprep.subr.mxu0 0.0
        %483 = vmatpush1.msra.mxu0 0.0
        %484 = vmatprep.subr.mxu0 0.0
        %485 = vmatpush1.msra.mxu0 0.0
        %486 = vmatprep.mubr.f32.mxu0 0.0
        %487 = vmatmul.mubr.f32.gmra.mrb[0].mxu0 %v404
        %v488 = vpop.f32.mrb[0].mxu0
        %v489 = vadd.f32 0.0, %v488
        %v490 = vpop.f32.mrb[0].mxu0
        %491 = vdwg.mxu0
        %v492 = vadd.f32 %v403, %v489
        %v493 = vld [vmem:[#allocation2 + $0x8] sm:$0xff]
        %s494 = scalar_lea.vmem [#allocation7], 256
        %v495 = vld [vmem:[%s494] sm:$0xff]
        %v496 = vld [vmem:[%s494 + $0x8] sm:$0xff]
        %v497 = vld [vmem:[%s494 + $0x10] sm:$0xff]
        %v498 = vld [vmem:[%s494 + $0x18] sm:$0xff]
        %v499 = vld [vmem:[%s494 + $0x20] sm:$0xff]
        %v500 = vld [vmem:[%s494 + $0x28] sm:$0xff]
        %v501 = vld [vmem:[%s494 + $0x30] sm:$0xff]
        %v502 = vld [vmem:[%s494 + $0x38] sm:$0xff]
        %v503 = vld [vmem:[%s494 + $0x40] sm:$0xff]
        %v504 = vld [vmem:[%s494 + $0x48] sm:$0xff]
        %v505 = vld [vmem:[%s494 + $0x50] sm:$0xff]
        %v506 = vld [vmem:[%s494 + $0x58] sm:$0xff]
        %v507 = vld [vmem:[%s494 + $0x60] sm:$0xff]
        %v508 = vld [vmem:[%s494 + $0x68] sm:$0xff]
        %v509 = vld [vmem:[%s494 + $0x70] sm:$0xff]
        %v510 = vld [vmem:[%s494 + $0x78] sm:$0xff]
        %511 = vmatprep.subr.mxu0 0.0
        %512 = vmatpush1.msra.mxu0 %v495
        %513 = vmatprep.subr.mxu0 0.0
        %514 = vmatpush1.msra.mxu0 %v496
        %515 = vmatprep.subr.mxu0 0.0
        %516 = vmatpush1.msra.mxu0 %v497
        %517 = vmatprep.subr.mxu0 0.0
        %518 = vmatpush1.msra.mxu0 %v498
        %519 = vmatprep.subr.mxu0 0.0
        %520 = vmatpush1.msra.mxu0 %v499
        %521 = vmatprep.subr.mxu0 0.0
        %522 = vmatpush1.msra.mxu0 %v500
        %523 = vmatprep.subr.mxu0 0.0
        %524 = vmatpush1.msra.mxu0 %v501
        %525 = vmatprep.subr.mxu0 0.0
        %526 = vmatpush1.msra.mxu0 %v502
        %527 = vmatprep.subr.mxu0 0.0
        %528 = vmatpush1.msra.mxu0 %v503
        %529 = vmatprep.subr.mxu0 0.0
        %530 = vmatpush1.msra.mxu0 %v504
        %531 = vmatprep.subr.mxu0 0.0
        %532 = vmatpush1.msra.mxu0 %v505
        %533 = vmatprep.subr.mxu0 0.0
        %534 = vmatpush1.msra.mxu0 %v506
        %535 = vmatprep.subr.mxu0 0.0
        %536 = vmatpush1.msra.mxu0 %v507
        %537 = vmatprep.subr.mxu0 0.0
        %538 = vmatpush1.msra.mxu0 %v508
        %539 = vmatprep.subr.mxu0 0.0
        %540 = vmatpush1.msra.mxu0 %v509
        %541 = vmatprep.subr.mxu0 0.0
        %542 = vmatpush1.msra.mxu0 %v510
        %543 = vmatprep.subr.mxu0 0.0
        %544 = vmatpush1.msra.mxu0 0.0
        %545 = vmatprep.subr.mxu0 0.0
        %546 = vmatpush1.msra.mxu0 0.0
        %547 = vmatprep.subr.mxu0 0.0
        %548 = vmatpush1.msra.mxu0 0.0
        %549 = vmatprep.subr.mxu0 0.0
        %550 = vmatpush1.msra.mxu0 0.0
        %551 = vmatprep.subr.mxu0 0.0
        %552 = vmatpush1.msra.mxu0 0.0
        %553 = vmatprep.subr.mxu0 0.0
        %554 = vmatpush1.msra.mxu0 0.0
        %555 = vmatprep.subr.mxu0 0.0
        %556 = vmatpush1.msra.mxu0 0.0
        %557 = vmatprep.subr.mxu0 0.0
        %558 = vmatpush1.msra.mxu0 0.0
        %559 = vmatprep.subr.mxu0 0.0
        %560 = vmatpush1.msra.mxu0 0.0
        %561 = vmatprep.subr.mxu0 0.0
        %562 = vmatpush1.msra.mxu0 0.0
        %563 = vmatprep.subr.mxu0 0.0
        %564 = vmatpush1.msra.mxu0 0.0
        %565 = vmatprep.subr.mxu0 0.0
        %566 = vmatpush1.msra.mxu0 0.0
        %567 = vmatprep.subr.mxu0 0.0
        %568 = vmatpush1.msra.mxu0 0.0
        %569 = vmatprep.subr.mxu0 0.0
        %570 = vmatpush1.msra.mxu0 0.0
        %571 = vmatprep.subr.mxu0 0.0
        %572 = vmatpush1.msra.mxu0 0.0
        %573 = vmatprep.subr.mxu0 0.0
        %574 = vmatpush1.msra.mxu0 0.0
        %575 = vmatprep.mubr.f32.mxu0 0.0
        %576 = vmatmul.mubr.f32.gmra.mrb[0].mxu0 %v493
        %v577 = vpop.f32.mrb[0].mxu0
        %v578 = vadd.f32 0.0, %v577
        %v579 = vpop.f32.mrb[0].mxu0
        %580 = vdwg.mxu0
        %v581 = vadd.f32 %v492, %v578
        %v582 = vmax.f32 %v581, 0.0
        %583 = vst [vmem:[#allocation3 + $0x8] sm:$0xff] %v582
        %v584 = vlaneseq
        %v585 = vshrl.u32 %v584, 7
        %v586 = vsub.s32 0, %v585
        %v587 = vrot.slane %v311, %v586
        %v588 = vld [vmem:[#allocation3 + $0x4] sm:$0xff]
        %v589 = vld [vmem:[#allocation9] sm:$0xff]
        %v590 = vld [vmem:[#allocation9 + $0x8] sm:$0xff]
        %v591 = vld [vmem:[#allocation9 + $0x10] sm:$0xff]
        %v592 = vld [vmem:[#allocation9 + $0x18] sm:$0xff]
        %v593 = vld [vmem:[#allocation9 + $0x20] sm:$0xff]
        %v594 = vld [vmem:[#allocation9 + $0x28] sm:$0xff]
        %v595 = vld [vmem:[#allocation9 + $0x30] sm:$0xff]
        %v596 = vld [vmem:[#allocation9 + $0x38] sm:$0xff]
        %v597 = vld [vmem:[#allocation9 + $0x40] sm:$0xff]
        %v598 = vld [vmem:[#allocation9 + $0x48] sm:$0xff]
        %v599 = vld [vmem:[#allocation9 + $0x50] sm:$0xff]
        %v600 = vld [vmem:[#allocation9 + $0x58] sm:$0xff]
        %v601 = vld [vmem:[#allocation9 + $0x60] sm:$0xff]
        %v602 = vld [vmem:[#allocation9 + $0x68] sm:$0xff]
        %v603 = vld [vmem:[#allocation9 + $0x70] sm:$0xff]
        %v604 = vld [vmem:[#allocation9 + $0x78] sm:$0xff]
        %605 = vmatprep.subr.mxu0 0.0
        %606 = vmatpush1.msra.mxu0 %v589
        %607 = vmatprep.subr.mxu0 0.0
        %608 = vmatpush1.msra.mxu0 %v590
        %609 = vmatprep.subr.mxu0 0.0
        %610 = vmatpush1.msra.mxu0 %v591
        %611 = vmatprep.subr.mxu0 0.0
        %612 = vmatpush1.msra.mxu0 %v592
        %613 = vmatprep.subr.mxu0 0.0
        %614 = vmatpush1.msra.mxu0 %v593
        %615 = vmatprep.subr.mxu0 0.0
        %616 = vmatpush1.msra.mxu0 %v594
        %617 = vmatprep.subr.mxu0 0.0
        %618 = vmatpush1.msra.mxu0 %v595
        %619 = vmatprep.subr.mxu0 0.0
        %620 = vmatpush1.msra.mxu0 %v596
        %621 = vmatprep.subr.mxu0 0.0
        %622 = vmatpush1.msra.mxu0 %v597
        %623 = vmatprep.subr.mxu0 0.0
        %624 = vmatpush1.msra.mxu0 %v598
        %625 = vmatprep.subr.mxu0 0.0
        %626 = vmatpush1.msra.mxu0 %v599
        %627 = vmatprep.subr.mxu0 0.0
        %628 = vmatpush1.msra.mxu0 %v600
        %629 = vmatprep.subr.mxu0 0.0
        %630 = vmatpush1.msra.mxu0 %v601
        %631 = vmatprep.subr.mxu0 0.0
        %632 = vmatpush1.msra.mxu0 %v602
        %633 = vmatprep.subr.mxu0 0.0
        %634 = vmatpush1.msra.mxu0 %v603
        %635 = vmatprep.subr.mxu0 0.0
        %636 = vmatpush1.msra.mxu0 %v604
        %637 = vmatprep.subr.mxu0 0.0
        %638 = vmatpush1.msra.mxu0 0.0
        %639 = vmatprep.subr.mxu0 0.0
        %640 = vmatpush1.msra.mxu0 0.0
        %641 = vmatprep.subr.mxu0 0.0
        %642 = vmatpush1.msra.mxu0 0.0
        %643 = vmatprep.subr.mxu0 0.0
        %644 = vmatpush1.msra.mxu0 0.0
        %645 = vmatprep.subr.mxu0 0.0
        %646 = vmatpush1.msra.mxu0 0.0
        %647 = vmatprep.subr.mxu0 0.0
        %648 = vmatpush1.msra.mxu0 0.0
        %649 = vmatprep.subr.mxu0 0.0
        %650 = vmatpush1.msra.mxu0 0.0
        %651 = vmatprep.subr.mxu0 0.0
        %652 = vmatpush1.msra.mxu0 0.0
        %653 = vmatprep.subr.mxu0 0.0
        %654 = vmatpush1.msra.mxu0 0.0
        %655 = vmatprep.subr.mxu0 0.0
        %656 = vmatpush1.msra.mxu0 0.0
        %657 = vmatprep.subr.mxu0 0.0
        %658 = vmatpush1.msra.mxu0 0.0
        %659 = vmatprep.subr.mxu0 0.0
        %660 = vmatpush1.msra.mxu0 0.0
        %661 = vmatprep.subr.mxu0 0.0
        %662 = vmatpush1.msra.mxu0 0.0
        %663 = vmatprep.subr.mxu0 0.0
        %664 = vmatpush1.msra.mxu0 0.0
        %665 = vmatprep.subr.mxu0 0.0
        %666 = vmatpush1.msra.mxu0 0.0
        %667 = vmatprep.subr.mxu0 0.0
        %668 = vmatpush1.msra.mxu0 0.0
        %669 = vmatprep.mubr.f32.mxu0 0.0
        %670 = vmatmul.mubr.f32.gmra.mrb[0].mxu0 %v588
        %v671 = vpop.f32.mrb[0].mxu0
        %v672 = vadd.f32 0.0, %v671
        %v673 = vpop.f32.mrb[0].mxu0
        %674 = vdwg.mxu0
        %v675 = vadd.f32 %v587, %v672
        %v676 = vld [vmem:[#allocation3 + $0x6] sm:$0xff]
        %s677 = scalar_lea.vmem [#allocation9], 128
        %v678 = vld [vmem:[%s677] sm:$0xff]
        %v679 = vld [vmem:[%s677 + $0x8] sm:$0xff]
        %v680 = vld [vmem:[%s677 + $0x10] sm:$0xff]
        %v681 = vld [vmem:[%s677 + $0x18] sm:$0xff]
        %v682 = vld [vmem:[%s677 + $0x20] sm:$0xff]
        %v683 = vld [vmem:[%s677 + $0x28] sm:$0xff]
        %v684 = vld [vmem:[%s677 + $0x30] sm:$0xff]
        %v685 = vld [vmem:[%s677 + $0x38] sm:$0xff]
        %v686 = vld [vmem:[%s677 + $0x40] sm:$0xff]
        %v687 = vld [vmem:[%s677 + $0x48] sm:$0xff]
        %v688 = vld [vmem:[%s677 + $0x50] sm:$0xff]
        %v689 = vld [vmem:[%s677 + $0x58] sm:$0xff]
        %v690 = vld [vmem:[%s677 + $0x60] sm:$0xff]
        %v691 = vld [vmem:[%s677 + $0x68] sm:$0xff]
        %v692 = vld [vmem:[%s677 + $0x70] sm:$0xff]
        %v693 = vld [vmem:[%s677 + $0x78] sm:$0xff]
        %694 = vmatprep.subr.mxu0 0.0
        %695 = vmatpush1.msra.mxu0 %v678
        %696 = vmatprep.subr.mxu0 0.0
        %697 = vmatpush1.msra.mxu0 %v679
        %698 = vmatprep.subr.mxu0 0.0
        %699 = vmatpush1.msra.mxu0 %v680
        %700 = vmatprep.subr.mxu0 0.0
        %701 = vmatpush1.msra.mxu0 %v681
        %702 = vmatprep.subr.mxu0 0.0
        %703 = vmatpush1.msra.mxu0 %v682
        %704 = vmatprep.subr.mxu0 0.0
        %705 = vmatpush1.msra.mxu0 %v683
        %706 = vmatprep.subr.mxu0 0.0
        %707 = vmatpush1.msra.mxu0 %v684
        %708 = vmatprep.subr.mxu0 0.0
        %709 = vmatpush1.msra.mxu0 %v685
        %710 = vmatprep.subr.mxu0 0.0
        %711 = vmatpush1.msra.mxu0 %v686
        %712 = vmatprep.subr.mxu0 0.0
        %713 = vmatpush1.msra.mxu0 %v687
        %714 = vmatprep.subr.mxu0 0.0
        %715 = vmatpush1.msra.mxu0 %v688
        %716 = vmatprep.subr.mxu0 0.0
        %717 = vmatpush1.msra.mxu0 %v689
        %718 = vmatprep.subr.mxu0 0.0
        %719 = vmatpush1.msra.mxu0 %v690
        %720 = vmatprep.subr.mxu0 0.0
        %721 = vmatpush1.msra.mxu0 %v691
        %722 = vmatprep.subr.mxu0 0.0
        %723 = vmatpush1.msra.mxu0 %v692
        %724 = vmatprep.subr.mxu0 0.0
        %725 = vmatpush1.msra.mxu0 %v693
        %726 = vmatprep.subr.mxu0 0.0
        %727 = vmatpush1.msra.mxu0 0.0
        %728 = vmatprep.subr.mxu0 0.0
        %729 = vmatpush1.msra.mxu0 0.0
        %730 = vmatprep.subr.mxu0 0.0
        %731 = vmatpush1.msra.mxu0 0.0
        %732 = vmatprep.subr.mxu0 0.0
        %733 = vmatpush1.msra.mxu0 0.0
        %734 = vmatprep.subr.mxu0 0.0
        %735 = vmatpush1.msra.mxu0 0.0
        %736 = vmatprep.subr.mxu0 0.0
        %737 = vmatpush1.msra.mxu0 0.0
        %738 = vmatprep.subr.mxu0 0.0
        %739 = vmatpush1.msra.mxu0 0.0
        %740 = vmatprep.subr.mxu0 0.0
        %741 = vmatpush1.msra.mxu0 0.0
        %742 = vmatprep.subr.mxu0 0.0
        %743 = vmatpush1.msra.mxu0 0.0
        %744 = vmatprep.subr.mxu0 0.0
        %745 = vmatpush1.msra.mxu0 0.0
        %746 = vmatprep.subr.mxu0 0.0
        %747 = vmatpush1.msra.mxu0 0.0
        %748 = vmatprep.subr.mxu0 0.0
        %749 = vmatpush1.msra.mxu0 0.0
        %750 = vmatprep.subr.mxu0 0.0
        %751 = vmatpush1.msra.mxu0 0.0
        %752 = vmatprep.subr.mxu0 0.0
        %753 = vmatpush1.msra.mxu0 0.0
        %754 = vmatprep.subr.mxu0 0.0
        %755 = vmatpush1.msra.mxu0 0.0
        %756 = vmatprep.subr.mxu0 0.0
        %757 = vmatpush1.msra.mxu0 0.0
        %758 = vmatprep.mubr.f32.mxu0 0.0
        %759 = vmatmul.mubr.f32.gmra.mrb[0].mxu0 %v676
        %v760 = vpop.f32.mrb[0].mxu0
        %v761 = vadd.f32 0.0, %v760
        %v762 = vpop.f32.mrb[0].mxu0
        %763 = vdwg.mxu0
        %v764 = vadd.f32 %v675, %v761
        %v765 = vld [vmem:[#allocation3 + $0x8] sm:$0xff]
        %s766 = scalar_lea.vmem [#allocation9], 256
        %v767 = vld [vmem:[%s766] sm:$0xff]
        %v768 = vld [vmem:[%s766 + $0x8] sm:$0xff]
        %v769 = vld [vmem:[%s766 + $0x10] sm:$0xff]
        %v770 = vld [vmem:[%s766 + $0x18] sm:$0xff]
        %v771 = vld [vmem:[%s766 + $0x20] sm:$0xff]
        %v772 = vld [vmem:[%s766 + $0x28] sm:$0xff]
        %v773 = vld [vmem:[%s766 + $0x30] sm:$0xff]
        %v774 = vld [vmem:[%s766 + $0x38] sm:$0xff]
        %v775 = vld [vmem:[%s766 + $0x40] sm:$0xff]
        %v776 = vld [vmem:[%s766 + $0x48] sm:$0xff]
        %v777 = vld [vmem:[%s766 + $0x50] sm:$0xff]
        %v778 = vld [vmem:[%s766 + $0x58] sm:$0xff]
        %v779 = vld [vmem:[%s766 + $0x60] sm:$0xff]
        %v780 = vld [vmem:[%s766 + $0x68] sm:$0xff]
        %v781 = vld [vmem:[%s766 + $0x70] sm:$0xff]
        %v782 = vld [vmem:[%s766 + $0x78] sm:$0xff]
        %783 = vmatprep.subr.mxu0 0.0
        %784 = vmatpush1.msra.mxu0 %v767
        %785 = vmatprep.subr.mxu0 0.0
        %786 = vmatpush1.msra.mxu0 %v768
        %787 = vmatprep.subr.mxu0 0.0
        %788 = vmatpush1.msra.mxu0 %v769
        %789 = vmatprep.subr.mxu0 0.0
        %790 = vmatpush1.msra.mxu0 %v770
        %791 = vmatprep.subr.mxu0 0.0
        %792 = vmatpush1.msra.mxu0 %v771
        %793 = vmatprep.subr.mxu0 0.0
        %794 = vmatpush1.msra.mxu0 %v772
        %795 = vmatprep.subr.mxu0 0.0
        %796 = vmatpush1.msra.mxu0 %v773
        %797 = vmatprep.subr.mxu0 0.0
        %798 = vmatpush1.msra.mxu0 %v774
        %799 = vmatprep.subr.mxu0 0.0
        %800 = vmatpush1.msra.mxu0 %v775
        %801 = vmatprep.subr.mxu0 0.0
        %802 = vmatpush1.msra.mxu0 %v776
        %803 = vmatprep.subr.mxu0 0.0
        %804 = vmatpush1.msra.mxu0 %v777
        %805 = vmatprep.subr.mxu0 0.0
        %806 = vmatpush1.msra.mxu0 %v778
        %807 = vmatprep.subr.mxu0 0.0
        %808 = vmatpush1.msra.mxu0 %v779
        %809 = vmatprep.subr.mxu0 0.0
        %810 = vmatpush1.msra.mxu0 %v780
        %811 = vmatprep.subr.mxu0 0.0
        %812 = vmatpush1.msra.mxu0 %v781
        %813 = vmatprep.subr.mxu0 0.0
        %814 = vmatpush1.msra.mxu0 %v782
        %815 = vmatprep.subr.mxu0 0.0
        %816 = vmatpush1.msra.mxu0 0.0
        %817 = vmatprep.subr.mxu0 0.0
        %818 = vmatpush1.msra.mxu0 0.0
        %819 = vmatprep.subr.mxu0 0.0
        %820 = vmatpush1.msra.mxu0 0.0
        %821 = vmatprep.subr.mxu0 0.0
        %822 = vmatpush1.msra.mxu0 0.0
        %823 = vmatprep.subr.mxu0 0.0
        %824 = vmatpush1.msra.mxu0 0.0
        %825 = vmatprep.subr.mxu0 0.0
        %826 = vmatpush1.msra.mxu0 0.0
        %827 = vmatprep.subr.mxu0 0.0
        %828 = vmatpush1.msra.mxu0 0.0
        %829 = vmatprep.subr.mxu0 0.0
        %830 = vmatpush1.msra.mxu0 0.0
        %831 = vmatprep.subr.mxu0 0.0
        %832 = vmatpush1.msra.mxu0 0.0
        %833 = vmatprep.subr.mxu0 0.0
        %834 = vmatpush1.msra.mxu0 0.0
        %835 = vmatprep.subr.mxu0 0.0
        %836 = vmatpush1.msra.mxu0 0.0
        %837 = vmatprep.subr.mxu0 0.0
        %838 = vmatpush1.msra.mxu0 0.0
        %839 = vmatprep.subr.mxu0 0.0
        %840 = vmatpush1.msra.mxu0 0.0
        %841 = vmatprep.subr.mxu0 0.0
        %842 = vmatpush1.msra.mxu0 0.0
        %843 = vmatprep.subr.mxu0 0.0
        %844 = vmatpush1.msra.mxu0 0.0
        %845 = vmatprep.subr.mxu0 0.0
        %846 = vmatpush1.msra.mxu0 0.0
        %847 = vmatprep.mubr.f32.mxu0 0.0
        %848 = vmatmul.mubr.f32.gmra.mrb[0].mxu0 %v765
        %v849 = vpop.f32.mrb[0].mxu0
        %v850 = vadd.f32 0.0, %v849
        %v851 = vpop.f32.mrb[0].mxu0
        %852 = vdwg.mxu0
        %v853 = vadd.f32 %v764, %v850
        %v854 = vmax.f32 %v853, 0.0
        %v855 = vld [vmem:[%s263] sm:$0xff]
        %v856 = vld [vmem:[#allocation10] sm:$0xff]
        %v857 = vld [vmem:[#allocation10 + $0x8] sm:$0xff]
        %v858 = vld [vmem:[#allocation10 + $0x10] sm:$0xff]
        %v859 = vld [vmem:[#allocation10 + $0x18] sm:$0xff]
        %v860 = vld [vmem:[#allocation10 + $0x20] sm:$0xff]
        %v861 = vld [vmem:[#allocation10 + $0x28] sm:$0xff]
        %v862 = vld [vmem:[#allocation10 + $0x30] sm:$0xff]
        %v863 = vld [vmem:[#allocation10 + $0x38] sm:$0xff]
        %v864 = vld [vmem:[#allocation10 + $0x40] sm:$0xff]
        %v865 = vld [vmem:[#allocation10 + $0x48] sm:$0xff]
        %v866 = vld [vmem:[#allocation10 + $0x50] sm:$0xff]
        %v867 = vld [vmem:[#allocation10 + $0x58] sm:$0xff]
        %v868 = vld [vmem:[#allocation10 + $0x60] sm:$0xff]
        %v869 = vld [vmem:[#allocation10 + $0x68] sm:$0xff]
        %v870 = vld [vmem:[#allocation10 + $0x70] sm:$0xff]
        %v871 = vld [vmem:[#allocation10 + $0x78] sm:$0xff]
        %v872 = vld [vmem:[%s3 + $0x2] sm:$0x1]
        %v873 = vlaneseq
        %v874 = vshrl.u32 %v873, 7
        %v875 = vsub.s32 0, %v874
        %v876 = vrot.slane %v872, %v875
        %877 = vmatprep.subr.mxu0 0.0
        %878 = vmatpush1.msra.mxu0 %v856
        %879 = vmatprep.subr.mxu0 0.0
        %880 = vmatpush1.msra.mxu0 %v857
        %881 = vmatprep.subr.mxu0 0.0
        %882 = vmatpush1.msra.mxu0 %v858
        %883 = vmatprep.subr.mxu0 0.0
        %884 = vmatpush1.msra.mxu0 %v859
        %885 = vmatprep.subr.mxu0 0.0
        %886 = vmatpush1.msra.mxu0 %v860
        %887 = vmatprep.subr.mxu0 0.0
        %888 = vmatpush1.msra.mxu0 %v861
        %889 = vmatprep.subr.mxu0 0.0
        %890 = vmatpush1.msra.mxu0 %v862
        %891 = vmatprep.subr.mxu0 0.0
        %892 = vmatpush1.msra.mxu0 %v863
        %893 = vmatprep.subr.mxu0 0.0
        %894 = vmatpush1.msra.mxu0 %v864
        %895 = vmatprep.subr.mxu0 0.0
        %896 = vmatpush1.msra.mxu0 %v865
        %897 = vmatprep.subr.mxu0 0.0
        %898 = vmatpush1.msra.mxu0 %v866
        %899 = vmatprep.subr.mxu0 0.0
        %900 = vmatpush1.msra.mxu0 %v867
        %901 = vmatprep.subr.mxu0 0.0
        %902 = vmatpush1.msra.mxu0 %v868
        %903 = vmatprep.subr.mxu0 0.0
        %904 = vmatpush1.msra.mxu0 %v869
        %905 = vmatprep.subr.mxu0 0.0
        %906 = vmatpush1.msra.mxu0 %v870
        %907 = vmatprep.subr.mxu0 0.0
        %908 = vmatpush1.msra.mxu0 %v871
        %909 = vmatprep.subr.mxu0 0.0
        %910 = vmatpush1.msra.mxu0 0.0
        %911 = vmatprep.subr.mxu0 0.0
        %912 = vmatpush1.msra.mxu0 0.0
        %913 = vmatprep.subr.mxu0 0.0
        %914 = vmatpush1.msra.mxu0 0.0
        %915 = vmatprep.subr.mxu0 0.0
        %916 = vmatpush1.msra.mxu0 0.0
        %917 = vmatprep.subr.mxu0 0.0
        %918 = vmatpush1.msra.mxu0 0.0
        %919 = vmatprep.subr.mxu0 0.0
        %920 = vmatpush1.msra.mxu0 0.0
        %921 = vmatprep.subr.mxu0 0.0
        %922 = vmatpush1.msra.mxu0 0.0
        %923 = vmatprep.subr.mxu0 0.0
        %924 = vmatpush1.msra.mxu0 0.0
        %925 = vmatprep.subr.mxu0 0.0
        %926 = vmatpush1.msra.mxu0 0.0
        %927 = vmatprep.subr.mxu0 0.0
        %928 = vmatpush1.msra.mxu0 0.0
        %929 = vmatprep.subr.mxu0 0.0
        %930 = vmatpush1.msra.mxu0 0.0
        %931 = vmatprep.subr.mxu0 0.0
        %932 = vmatpush1.msra.mxu0 0.0
        %933 = vmatprep.subr.mxu0 0.0
        %934 = vmatpush1.msra.mxu0 0.0
        %935 = vmatprep.subr.mxu0 0.0
        %936 = vmatpush1.msra.mxu0 0.0
        %937 = vmatprep.subr.mxu0 0.0
        %938 = vmatpush1.msra.mxu0 0.0
        %939 = vmatprep.subr.mxu0 0.0
        %940 = vmatpush1.msra.mxu0 0.0
        %941 = vmatprep.mubr.f32.mxu0 0.0
        %942 = vmatmul.mubr.f32.gmra.mrb[0].mxu0 %v855
        %v943 = vpop.f32.mrb[0].mxu0
        %v944 = vadd.f32 %v876, %v943
        %v945 = vpop.f32.mrb[0].mxu0
        %946 = vdwg.mxu0
        %v947 = vadd.f32 %v854, %v944
        %v948 = vmax.f32 %v947, 0.0
        %949 = vst [vmem:[%s301] sm:$0xff] %v948
        %s950 = sadd.s32 %s29, 1
        %p951 = scmp.lt.s32.totalorder %s950, 4
        // Predicated region
        $region61: #{tpu_custom_call.1} parent=39 // pred_check
          %p952 = pneg %p951
        $region62: #{tpu_custom_call.1} parent=39 // pred_check_branch
          %954 = sbr.rel (%p952) target = $region64
        $region63: #{tpu_custom_call.1} parent=39 // pred_region
          %v955 = vld [vmem:[#allocation2 + $0xc] sm:$0xf]
          %956 = vst [vmem:[#allocation2 + $0x4] sm:$0xf] %v955
          %v957 = vld [vmem:[#allocation3 + $0xc] sm:$0xf]
          %958 = vst [vmem:[#allocation3 + $0x4] sm:$0xf] %v957
        $region64: #{tpu_custom_call.1} parent=39 // pred_fallthru
          _
        %s959 = sand.u32 %s158, 1
        %s960 = scalar_lea.sflag [#allocation6], %s959
        %s961 = sand.u32 %s158, 1
        %s962 = smul.addr %s961, 8
        %s963 = scalar_lea.vmem [#allocation12], %s962
        // Predicated region
        $region65: #{tpu_custom_call.1} parent=39 // pred_check
          %p964 = pneg %p168
        $region66: #{tpu_custom_call.1} parent=39 // pred_check_branch
          %966 = sbr.rel (%p964) target = $region68
        $region67: #{tpu_custom_call.1} parent=39 // pred_region
          %s968 = ssub.s32 128, 128
          %969 = vsyncadd %s960, %s968
          %s970 = smul.addr %s28, 4
          %s971 = sadd.s32 %s29, %s970
          %s972 = smul.addr %s971, 128
          %s973 = scalar_lea.hbm %s5, %s972
          %s975 = sshll.u32 %s963, 4
          %s976 = int_to_ptr.vmem [resolvable:$true] %s975
          %978 = dma.vmem_to_hbm [thread:$0]  %s976, 128, %s973, %s960
        $region68: #{tpu_custom_call.1} parent=39 // pred_fallthru
          _
      $region40: #{tpu_custom_call.1} parent=5 // pred_fallthru
        _
      %p979 = scmp.le.s32.totalorder 2, %s19
      // Predicated region
      $region69: #{tpu_custom_call.1} parent=5 // pred_check
        %p980 = pneg %p979
      $region70: #{tpu_custom_call.1} parent=5 // pred_check_branch
        %982 = sbr.rel (%p980) target = $region72
      $region71: #{tpu_custom_call.1} parent=5 // pred_region
        %s983 = ssub.s32 %s19, 2
        // Predicated region
        $region73: #{tpu_custom_call.1} parent=71 // pred_check
          %p984 = pneg %p174
        $region74: #{tpu_custom_call.1} parent=71 // pred_check_branch
          %986 = sbr.rel (%p984) target = $region76
        $region75: #{tpu_custom_call.1} parent=71 // pred_region
          %s987 = sand.u32 %s159, 1
          %s988 = scalar_lea.sflag [#allocation6], %s987
          %s989 = sand.u32 %s159, 1
          %s990 = smul.addr %s989, 8
          %s991 = scalar_lea.vmem [#allocation12], %s990
          %992 = dma.done %s988, 128
        $region76: #{tpu_custom_call.1} parent=71 // pred_fallthru
          _
      $region72: #{tpu_custom_call.1} parent=5 // pred_fallthru
        _
    $region6: #{tpu_custom_call.1} parent=1 // loop_footer
      %s23 = sadd.s32 1, %s19
    $region7: #{tpu_custom_call.1} parent=1 // loop_footer_branch
      %18 = sbr.rel target = $region3
    $region8: #{tpu_custom_call.1} parent=1 // loop_exit
      _
    %993 = vsyncpa [#allocation5], 1
    %s994 = scalar_lea.sflag [#allocation5], 1
    %995 = vsyncpa %s994, 1
    %996 = vsyncpa [#allocation8], 1
    %997 = vsyncpa [#allocation11], 1
    %998 = vsyncpa [#allocation6], 1
    %s999 = scalar_lea.sflag [#allocation6], 1
    %1000 = vsyncpa %s999, 1

</llo_original>
